<compile_context>
chip_gen: v7x
topology: tpu7x:2x2x1
jax: 0.10.0
libtpu: 0.0.40
codegen_flags: <defaults>
</compile_context>

<pallas_src>
import functools

import jax
import jax.numpy as jnp
from jax.experimental import pallas as pl
from jax.experimental.pallas import tpu as pltpu


def _build_pe(d_model: int, max_len: int = 1024) -> jnp.ndarray:
    """Deterministic sinusoidal table, shape (max_len, 1, d_model)."""
    position = jnp.arange(0, max_len, dtype=jnp.float32)[:, None]           # (L, 1)
    div_term = jnp.exp(
        jnp.arange(0, d_model, 2, dtype=jnp.float32)
        * (-jnp.log(jnp.float32(10000.0)) / d_model)
    )                                                                        # (D/2,)
    pe = jnp.zeros((max_len, d_model), dtype=jnp.float32)
    pe = pe.at[:, 0::2].set(jnp.sin(position * div_term))
    pe = pe.at[:, 1::2].set(jnp.cos(position * div_term))
    # unsqueeze(0).transpose(0, 1) -> (max_len, 1, d_model)
    return pe[:, None, :]


def _pe_add_kernel(x_ref, pe_ref, o_ref, *, batch: int, d_model: int):
    # x_ref/o_ref: (tile_s, B*D) lane-dense slab; pe_ref: (tile_s, D).
    pe = pe_ref[...]                                   # load once per block
    for b in range(batch):                             # static loop -> static slices
        sl = slice(b * d_model, (b + 1) * d_model)
        o_ref[:, sl] = x_ref[:, sl] + pe


def positional_encoding_forward(x: jnp.ndarray, pe: jnp.ndarray) -> jnp.ndarray:
    """x: (S, B, D); pe: (max_len, 1, D). Returns x + pe[:S]."""
    S, B, D = x.shape

    # Free (contiguous) reshape to a lane-dense 2-D view.
    x2 = x.reshape(S, B * D)
    # Compact pe slice, matched to the activation dtype (no in-kernel promotion).
    pe2 = pe[:S, 0, :].astype(x.dtype)                 # (S, D)

    # --- Tile sizing: target ~8 MiB per pipeline stage (Pallas double-buffers),
    # which stays far below the 64 MiB physical VMEM of v7x and the raised
    # scoped limit below, while being large enough to hit the HBM roofline.
    itemsize = jnp.dtype(x.dtype).itemsize
    row_bytes = (2 * B + 1) * D * itemsize             # x row + out row + pe row
    target_stage_bytes = 8 * 1024 * 1024
    tile_s = max(8, target_stage_bytes // row_bytes)
    tile_s = (tile_s // 8) * 8                          # sublane-aligned
    tile_s = min(S, tile_s)
    if S >= 16 and tile_s >= S:
        # Keep >= 2 grid steps so both TensorCores on v7x get work.
        tile_s = max(8, ((S // 2) // 8) * 8)

    grid = (pl.cdiv(S, tile_s),)

    kernel = functools.partial(_pe_add_kernel, batch=B, d_model=D)

    out2 = pl.pallas_call(
        kernel,
        out_shape=jax.ShapeDtypeStruct((S, B * D), x.dtype),
        grid_spec=pltpu.PrefetchScalarGridSpec(
            num_scalar_prefetch=0,
            grid=grid,
            in_specs=[
                pl.BlockSpec((tile_s, B * D), lambda i: (i, 0)),
                pl.BlockSpec((tile_s, D), lambda i: (i, 0)),
            ],
            out_specs=pl.BlockSpec((tile_s, B * D), lambda i: (i, 0)),
        ),
        compiler_params=pltpu.CompilerParams(
            dimension_semantics=("parallel",),
            vmem_limit_bytes=48 * 1024 * 1024,          # above 16/32 MiB defaults,
                                                        # below v7x's 64 MiB physical
        ),
        input_output_aliases={0: 0},                    # in-place on x when donated
    )(x2, pe2)

    return out2.reshape(S, B, D)


if __name__ == "__main__":
    d_model = 32
    max_len = 1024
    seq = 8
    batch = 2

    key = jax.random.PRNGKey(0)
    x = jax.random.normal(key, (seq, batch, d_model), dtype=jnp.float32)

    pe = _build_pe(d_model, max_len)

    # Reference in plain JAX (same math as the PyTorch forward), computed
    # before the kernel call.
    ref = x + pe[:seq]

    out = positional_encoding_forward(x, pe)
    out = jax.block_until_ready(out)

    assert out.shape == (seq, batch, d_model)
    assert jnp.allclose(out, ref, atol=1e-6), "mismatch vs reference"

    print("KERNEL_OK")
</pallas_src>

<mosaic_0001>
module attributes {stable_mosaic.version = 11 : i64} {
  func.func @_pe_add_kernel(%arg0: i32, %arg1: memref<8x64xf32, #tpu.memory_space<vmem>>, %arg2: memref<8x32xf32, #tpu.memory_space<vmem>>, %arg3: memref<8x64xf32, #tpu.memory_space<vmem>>) attributes {dimension_semantics = [#tpu.dimension_semantics<parallel>], iteration_bounds = array<i64: 1>, scalar_prefetch = 0 : i64, scratch_operands = 0 : i64, tpu.core_type = #tpu.core_type<tc>, window_params = [{transform_indices = @transform_0, window_bounds = array<i64: 8, 64>}, {transform_indices = @transform_1, window_bounds = array<i64: 8, 32>}, {transform_indices = @transform_2, window_bounds = array<i64: 8, 64>}]} {
    %c0 = arith.constant 0 : index
    %c0_0 = arith.constant 0 : index
    %0 = vector.load %arg2[%c0, %c0_0] : memref<8x32xf32, #tpu.memory_space<vmem>>, vector<8x32xf32>
    %c0_1 = arith.constant 0 : index
    %c0_2 = arith.constant 0 : index
    %1 = vector.load %arg1[%c0_1, %c0_2] : memref<8x64xf32, #tpu.memory_space<vmem>>, vector<8x32xf32>
    %2 = arith.addf %1, %0 : vector<8x32xf32>
    %c0_3 = arith.constant 0 : index
    %c0_4 = arith.constant 0 : index
    %3 = vector.load %arg3[%c0_3, %c0_4] : memref<8x64xf32, #tpu.memory_space<vmem>>, vector<8x32xf32>
    tpu.vector_store %arg3[%c0_3, %c0_4], %2 {strides = array<i32>} : memref<8x64xf32, #tpu.memory_space<vmem>>, vector<8x32xf32>,
    %c0_5 = arith.constant 0 : index
    %c32 = arith.constant 32 : index
    %4 = vector.load %arg1[%c0_5, %c32] : memref<8x64xf32, #tpu.memory_space<vmem>>, vector<8x32xf32>
    %5 = arith.addf %4, %0 : vector<8x32xf32>
    %c0_6 = arith.constant 0 : index
    %c32_7 = arith.constant 32 : index
    %6 = vector.load %arg3[%c0_6, %c32_7] : memref<8x64xf32, #tpu.memory_space<vmem>>, vector<8x32xf32>
    tpu.vector_store %arg3[%c0_6, %c32_7], %5 {strides = array<i32>} : memref<8x64xf32, #tpu.memory_space<vmem>>, vector<8x32xf32>,
    return
  }
  func.func @transform_0(%arg0: i32) -> (i32, i32) {
    %c0_i32 = arith.constant 0 : i32
    %c0_i32_0 = arith.constant 0 : i32
    return %arg0, %c0_i32 : i32, i32
  }
  func.func @transform_1(%arg0: i32) -> (i32, i32) {
    %c0_i32 = arith.constant 0 : i32
    %c0_i32_0 = arith.constant 0 : i32
    return %arg0, %c0_i32 : i32, i32
  }
  func.func @transform_2(%arg0: i32) -> (i32, i32) {
    %c0_i32 = arith.constant 0 : i32
    %c0_i32_0 = arith.constant 0 : i32
    return %arg0, %c0_i32 : i32, i32
  }
}

</mosaic_0001>

<llo_original>
// kernel: tpu_custom_call.1
$region0: #{tpu_custom_call.1}
  #allocation0 [shape = 'u32[]', space=smem, size = 0x4, offset = 0x4, fixed_abs, tag = 'smem constant byte address 0x4 - core index']
  #allocation1 [shape = 'u32[144,128]{1,0:T(1,128)}', space=vmem, size = 0x12000, scoped, tag = 'internal scratch']
  %s0 = inlined_call_operand.hbm [shape: f32[8,64], index: 0, kind: input, shape index: {}, may-alias: {0,2}]
  %s1 = inlined_call_operand.vmem [shape: f32[8,32], index: 1, kind: input, shape index: {}]
  %s2 = inlined_call_operand.hbm [shape: f32[8,64], index: 2, kind: output, shape index: {}, may-alias: {0,2}]
  %s3 = sld [smem:[#allocation0]]
  $region22: #{tpu_custom_call.1} parent=0
    _
  %s5 = ssub.s32 1, %s3
  %s6 = scalar_select 0, %s5, %s3
  $region1: #{tpu_custom_call.1} parent=0
    #allocation2 [shape = 'u8[4096]{0}', space=vmem, size = 0x1000, scoped, tag = 'input window, operand 0, single buffered']
    #allocation3 [shape = 's32[1]{0}', space=sflag, size = 0x4, scoped, tag = 'scoped memory for tpu_custom_call.1']
    #allocation4 [shape = 's32[1]{0}', space=sflag, size = 0x4, scoped, tag = 'scoped memory for tpu_custom_call.1']
    #allocation5 [shape = 'u8[4096]{0}', space=vmem, size = 0x1000, scoped, tag = 'output window, operand 0, single buffered']
    %7 = vsyncpa [#allocation3], 0
    %8 = vsyncpa [#allocation4], 0
    // Predicated region
    $region2: #{tpu_custom_call.1} parent=1 // pred_check
      _
    $region3: #{tpu_custom_call.1} parent=1 // pred_check_branch
      %10 = sbr.rel (0) target = $region5
    $region4: #{tpu_custom_call.1} parent=1 // pred_region
      %s12 = ssub.s32 128, 128
      %13 = vsyncadd [#allocation3], %s12
      %s15 = sshll.u32 [#allocation2], 4
      %s16 = int_to_ptr.vmem [resolvable:$true] %s15
      %18 = dma.hbm_to_vmem [thread:$0]  %s0, 128, %s16, [#allocation3]
    $region5: #{tpu_custom_call.1} parent=1 // pred_fallthru
      _
    // Predicated region
    $region6: #{tpu_custom_call.1} parent=1 // pred_check
      _
    $region7: #{tpu_custom_call.1} parent=1 // pred_check_branch
      %20 = sbr.rel (0) target = $region9
    $region8: #{tpu_custom_call.1} parent=1 // pred_region
      _
    $region9: #{tpu_custom_call.1} parent=1 // pred_fallthru
      _
    // Predicated region
    $region10: #{tpu_custom_call.1} parent=1 // pred_check
      _
    $region11: #{tpu_custom_call.1} parent=1 // pred_check_branch
      %22 = sbr.rel (0) target = $region13
    $region12: #{tpu_custom_call.1} parent=1 // pred_region
      %23 = dma.done [#allocation3], 128
    $region13: #{tpu_custom_call.1} parent=1 // pred_fallthru
      _
    %v24 = vld [vmem:[%s1] sm:$0xff]
    %v25 = vld [vmem:[#allocation2] sm:$0xff]
    %v26 = vadd.f32 %v25, %v24
    %vm27 = vcmask 261120
    %28 = vst.msk [vmem:[#allocation5] sm:$0xff] %vm27, %v26
    %v29 = vld [vmem:[#allocation2] sm:$0xff]
    %31 = vrot.lane.b32.xlu0 %v24, 32
    %v32 = vpop.permute.xlu0 %31
    %v34 = vadd.f32 %v29, %v32
    %vm35 = vcmask 523520
    %36 = vst.msk [vmem:[#allocation5] sm:$0xff] %vm35, %v34
    // Predicated region
    $region14: #{tpu_custom_call.1} parent=1 // pred_check
      _
    $region15: #{tpu_custom_call.1} parent=1 // pred_check_branch
      %38 = sbr.rel (0) target = $region17
    $region16: #{tpu_custom_call.1} parent=1 // pred_region
      %s40 = ssub.s32 128, 128
      %41 = vsyncadd [#allocation4], %s40
      %s43 = sshll.u32 [#allocation5], 4
      %s44 = int_to_ptr.vmem [resolvable:$true] %s43
      %46 = dma.vmem_to_hbm [thread:$0]  %s44, 128, %s2, [#allocation4]
    $region17: #{tpu_custom_call.1} parent=1 // pred_fallthru
      _
    // Predicated region
    $region18: #{tpu_custom_call.1} parent=1 // pred_check
      _
    $region19: #{tpu_custom_call.1} parent=1 // pred_check_branch
      %48 = sbr.rel (0) target = $region21
    $region20: #{tpu_custom_call.1} parent=1 // pred_region
      %49 = dma.done [#allocation4], 128
    $region21: #{tpu_custom_call.1} parent=1 // pred_fallthru
      _
    %50 = vsyncpa [#allocation3], 1
    %51 = vsyncpa [#allocation4], 1

</llo_original>
